<compile_context>
chip_gen: v7x
topology: tpu7x:2x2x1
jax: 0.10.0
libtpu: 0.0.40
codegen_flags: <defaults>
</compile_context>

<pallas_src>
import jax
import jax.numpy as jnp
from jax.experimental import pallas as pl
from jax.experimental.pallas import tpu as pltpu


_VMEM_SPEC = pl.BlockSpec(memory_space=pltpu.MemorySpace.VMEM)


# ----------------------------------------------------------------------------
# One-time parameter preparation (hoisted out of the per-step path).
#
#   gi      = x @ Wp^T + bp
#   gates_x = gi @ Wih^T + bih
#           = x @ (Wp^T @ Wih^T) + (bp @ Wih^T + bih)  =  x @ W_fused + b_fused
# ----------------------------------------------------------------------------
def prepare_params(params, latent_dim):
    wih_t = params["w_ih"].T.astype(jnp.float32)                       # [D, 3H]
    w_fused = params["w_proj"].T.astype(jnp.float32) @ wih_t           # [D, 3H]
    b_fused = params["b_proj"].astype(jnp.float32) @ wih_t + params["b_ih"]  # [3H]
    whh_t = params["w_hh"].T.astype(jnp.float32)                       # [H, 3H]
    b_hh = params["b_hh"].astype(jnp.float32)                          # [3H]

    D = w_fused.shape[0]
    H = whh_t.shape[0]
    G = 3 * H

    # Single-step fused weight:  [x | h] @ blockdiag(W_fused, Whh^T) = [gx | gh]
    w_big = jnp.zeros((D + H, 2 * G), jnp.float32)
    w_big = w_big.at[:D, :G].set(w_fused)
    w_big = w_big.at[D:, G:].set(whh_t)
    b_big = jnp.concatenate([b_fused, b_hh]).reshape(1, 2 * G)

    return {
        "wf_z": w_fused[:latent_dim],          # [Lz, 3H]   rollout input weights
        "wf_a": w_fused[latent_dim:],          # [La, 3H]
        "bf": b_fused.reshape(1, G),           # [1, 3H]
        "whh_t": whh_t,                        # [H, 3H]
        "bhh": b_hh.reshape(1, G),             # [1, 3H]
        "w_big": w_big,                        # [D+H, 6H]  single-step fused weight
        "b_big": b_big,                        # [1, 6H]
    }


# ----------------------------------------------------------------------------
# Single-step kernel (exactly RecurrentModel.forward).
# One MXU pass: [z|a|h] @ blockdiag(W_fused, Whh^T) + [b_fused|b_hh].
# ----------------------------------------------------------------------------
def _step_kernel(z_ref, a_ref, h_ref, wbig_ref, bbig_ref, out_ref):
    h = h_ref[...].astype(jnp.float32)
    H = h.shape[-1]
    G = 3 * H

    xh = jnp.concatenate(
        [z_ref[...].astype(jnp.float32), a_ref[...].astype(jnp.float32), h],
        axis=-1)                                                     # [B, D+H]
    g = jnp.dot(xh, wbig_ref[...],
                preferred_element_type=jnp.float32) + bbig_ref[...]  # [B, 6H]
    gx = g[:, :G]
    gh = g[:, G:]

    ru = jax.nn.sigmoid(gx[:, :2 * H] + gh[:, :2 * H])   # r and z gates in one pass
    r = ru[:, :H]
    u = ru[:, H:]
    n = jnp.tanh(gx[:, 2 * H:] + r * gh[:, 2 * H:])      # b_hn stays inside r*(...)
    out_ref[...] = (n + u * (h - n)).astype(out_ref.dtype)


def recurrent_model_forward(z_t, a_t, h_prev, prepared):
    """Pallas-backed equivalent of RecurrentModel.forward (one timestep)."""
    B, H = h_prev.shape
    return pl.pallas_call(
        _step_kernel,
        out_shape=jax.ShapeDtypeStruct((B, H), h_prev.dtype),
        in_specs=[_VMEM_SPEC] * 5,
        out_specs=_VMEM_SPEC,
    )(z_t, a_t, h_prev, prepared["w_big"], prepared["b_big"])


# ----------------------------------------------------------------------------
# T-step rollout: ONE pallas_call, no grid.  Prologue computes the input-path
# gates for all T steps in a single batched matmul; the serial recurrence then
# only does h @ Whh^T + gate math per step, with h carried in registers.
# ----------------------------------------------------------------------------
def _rollout_kernel(z2_ref, a2_ref, h0_ref,
                    wfz_ref, wfa_ref, bf_ref, whh_ref, bhh_ref,
                    hseq_ref):
    T, B, H = hseq_ref.shape
    G = 3 * H

    # Prologue (off the serial chain): gx for all T*B rows at once.
    gx_all = (jnp.dot(z2_ref[...], wfz_ref[...], preferred_element_type=jnp.float32)
              + jnp.dot(a2_ref[...], wfa_ref[...], preferred_element_type=jnp.float32)
              + bf_ref[...])                                         # [T*B, 3H]

    whh = whh_ref[...]                                               # [H, 3H]
    bhh = jnp.broadcast_to(bhh_ref[...], (B, G))                     # hoisted broadcast
    h = h0_ref[...].astype(jnp.float32)                              # register carry

    for t in range(T):                                               # fully unrolled
        gx = gx_all[t * B:(t + 1) * B]
        gh = jnp.dot(h, whh, preferred_element_type=jnp.float32) + bhh
        ru = jax.nn.sigmoid(gx[:, :2 * H] + gh[:, :2 * H])
        r = ru[:, :H]
        u = ru[:, H:]
        n = jnp.tanh(gx[:, 2 * H:] + r * gh[:, 2 * H:])
        h = n + u * (h - n)
        hseq_ref[t] = h.astype(hseq_ref.dtype)


def recurrent_model_rollout(z_seq, a_seq, h0, prepared):
    """Applies RecurrentModel.forward over T steps in a single kernel launch."""
    T, B, Lz = z_seq.shape
    La = a_seq.shape[-1]
    H = h0.shape[-1]

    # Free XLA-side reshapes so the kernel prologue sees plain 2-D matmuls.
    z2 = z_seq.reshape(T * B, Lz)
    a2 = a_seq.reshape(T * B, La)

    return pl.pallas_call(
        _rollout_kernel,
        out_shape=jax.ShapeDtypeStruct((T, B, H), h0.dtype),
        in_specs=[_VMEM_SPEC] * 8,
        out_specs=_VMEM_SPEC,
    )(z2, a2, h0,
      prepared["wf_z"], prepared["wf_a"], prepared["bf"],
      prepared["whh_t"], prepared["bhh"])


# ----------------------------------------------------------------------------
# Pure-JAX reference matching torch Linear + GRUCell semantics (unfused).
# ----------------------------------------------------------------------------
def _reference_step(z_t, a_t, h_prev, params):
    x = jnp.concatenate([z_t, a_t], axis=-1)
    gi = x @ params["w_proj"].T + params["b_proj"]
    gx = gi @ params["w_ih"].T + params["b_ih"]
    gh = h_prev @ params["w_hh"].T + params["b_hh"]
    H = h_prev.shape[-1]
    r = jax.nn.sigmoid(gx[:, :H] + gh[:, :H])
    u = jax.nn.sigmoid(gx[:, H:2 * H] + gh[:, H:2 * H])
    n = jnp.tanh(gx[:, 2 * H:] + r * gh[:, 2 * H:])
    return (1.0 - u) * n + u * h_prev


if __name__ == "__main__":
    latent_dim, action_dim, hidden_dim, batch, T = 16, 16, 32, 8, 8
    D = latent_dim + action_dim

    key = jax.random.PRNGKey(0)
    ks = jax.random.split(key, 12)

    # Deterministic synthetic parameters (torch-init-like uniform scale).
    s_lin = 1.0 / jnp.sqrt(D)
    s_gru = 1.0 / jnp.sqrt(hidden_dim)
    params = {
        "w_proj": jax.random.uniform(ks[0], (D, D), jnp.float32, -s_lin, s_lin),
        "b_proj": jax.random.uniform(ks[1], (D,), jnp.float32, -s_lin, s_lin),
        "w_ih":   jax.random.uniform(ks[2], (3 * hidden_dim, D), jnp.float32, -s_gru, s_gru),
        "b_ih":   jax.random.uniform(ks[3], (3 * hidden_dim,), jnp.float32, -s_gru, s_gru),
        "w_hh":   jax.random.uniform(ks[4], (3 * hidden_dim, hidden_dim), jnp.float32, -s_gru, s_gru),
        "b_hh":   jax.random.uniform(ks[5], (3 * hidden_dim,), jnp.float32, -s_gru, s_gru),
    }

    # One-time weight fusion / transposition (hoisted out of the step path).
    prepared = prepare_params(params, latent_dim)
    prepared = jax.tree_util.tree_map(jax.block_until_ready, prepared)

    # --- single-step forward (matches RecurrentModel.forward) ---------------
    z_t = jax.random.normal(ks[6], (batch, latent_dim), jnp.float32)
    a_t = jax.random.normal(ks[7], (batch, action_dim), jnp.float32)
    h_prev = jax.random.normal(ks[8], (batch, hidden_dim), jnp.float32)

    h_t = jax.block_until_ready(recurrent_model_forward(z_t, a_t, h_prev, prepared))
    ref = _reference_step(z_t, a_t, h_prev, params)
    assert h_t.shape == (batch, hidden_dim)
    assert jnp.allclose(h_t, ref, atol=1e-4, rtol=1e-4), "single-step mismatch vs reference"

    # --- T-step rollout: one launch, unrolled time loop, resident weights ---
    z_seq = jax.random.normal(ks[9], (T, batch, latent_dim), jnp.float32)
    a_seq = jax.random.normal(ks[10], (T, batch, action_dim), jnp.float32)
    h0 = jax.random.normal(ks[11], (batch, hidden_dim), jnp.float32)

    h_seq = jax.block_until_ready(recurrent_model_rollout(z_seq, a_seq, h0, prepared))

    h = h0
    refs = []
    for t in range(T):
        h = _reference_step(z_seq[t], a_seq[t], h, params)
        refs.append(h)
    ref_seq = jnp.stack(refs, axis=0)
    assert h_seq.shape == (T, batch, hidden_dim)
    assert jnp.allclose(h_seq, ref_seq, atol=1e-4, rtol=1e-4), "rollout mismatch vs reference"

    print("KERNEL_OK")
</pallas_src>

<mosaic_0001>
module attributes {stable_mosaic.version = 11 : i64} {
  func.func @_step_kernel(%arg0: memref<8x16xf32, #tpu.memory_space<vmem>>, %arg1: memref<8x16xf32, #tpu.memory_space<vmem>>, %arg2: memref<8x32xf32, #tpu.memory_space<vmem>>, %arg3: memref<64x192xf32, #tpu.memory_space<vmem>>, %arg4: memref<1x192xf32, #tpu.memory_space<vmem>>, %arg5: memref<8x32xf32, #tpu.memory_space<vmem>>) attributes {dimension_semantics = [], scalar_prefetch = 0 : i64, scratch_operands = 0 : i64, tpu.core_type = #tpu.core_type<tc>} {
    %c0 = arith.constant 0 : index
    %c0_0 = arith.constant 0 : index
    %0 = vector.load %arg2[%c0, %c0_0] : memref<8x32xf32, #tpu.memory_space<vmem>>, vector<8x32xf32>
    %c0_1 = arith.constant 0 : index
    %c0_2 = arith.constant 0 : index
    %1 = vector.load %arg0[%c0_1, %c0_2] : memref<8x16xf32, #tpu.memory_space<vmem>>, vector<8x16xf32>
    %c0_3 = arith.constant 0 : index
    %c0_4 = arith.constant 0 : index
    %2 = vector.load %arg1[%c0_3, %c0_4] : memref<8x16xf32, #tpu.memory_space<vmem>>, vector<8x16xf32>
    %3 = tpu.concatenate %1, %2, %0 in 1 : vector<8x16xf32>, vector<8x16xf32>, vector<8x32xf32> -> vector<8x64xf32>
    %c0_5 = arith.constant 0 : index
    %c0_6 = arith.constant 0 : index
    %4 = vector.load %arg3[%c0_5, %c0_6] : memref<64x192xf32, #tpu.memory_space<vmem>>, vector<64x192xf32>
    %cst = arith.constant dense<0.000000e+00> : vector<8x192xf32>
    %5 = tpu.matmul %3, %4, %cst {dimension_numbers = #tpu.dot_dimension_numbers<[1], [0], [0], [1], [0, 0, 1, 1], [], []>} : vector<8x64xf32>, vector<64x192xf32>, vector<8x192xf32> -> vector<8x192xf32>
    %c0_7 = arith.constant 0 : index
    %c0_8 = arith.constant 0 : index
    %6 = vector.load %arg4[%c0_7, %c0_8] : memref<1x192xf32, #tpu.memory_space<vmem>>, vector<1x192xf32>
    %7 = vector.broadcast %6 : vector<1x192xf32> to vector<8x192xf32>
    %8 = arith.addf %5, %7 : vector<8x192xf32>
    %9 = vector.extract_strided_slice %8 {offsets = [0, 0], sizes = [8, 96], strides = [1, 1]} : vector<8x192xf32> to vector<8x96xf32>
    %10 = vector.extract_strided_slice %8 {offsets = [0, 96], sizes = [8, 96], strides = [1, 1]} : vector<8x192xf32> to vector<8x96xf32>
    %11 = vector.extract_strided_slice %9 {offsets = [0, 0], sizes = [8, 64], strides = [1, 1]} : vector<8x96xf32> to vector<8x64xf32>
    %12 = vector.extract_strided_slice %10 {offsets = [0, 0], sizes = [8, 64], strides = [1, 1]} : vector<8x96xf32> to vector<8x64xf32>
    %13 = arith.addf %11, %12 : vector<8x64xf32>
    %14 = arith.negf %13 : vector<8x64xf32>
    %15 = math.exp %14 : vector<8x64xf32>
    %cst_9 = arith.constant 1.000000e+00 : f32
    %16 = vector.broadcast %cst_9 : f32 to vector<8x64xf32>
    %17 = arith.addf %16, %15 : vector<8x64xf32>
    %18 = arith.divf %16, %17 : vector<8x64xf32>
    %19 = vector.extract_strided_slice %18 {offsets = [0, 0], sizes = [8, 32], strides = [1, 1]} : vector<8x64xf32> to vector<8x32xf32>
    %20 = vector.extract_strided_slice %18 {offsets = [0, 32], sizes = [8, 32], strides = [1, 1]} : vector<8x64xf32> to vector<8x32xf32>
    %21 = vector.extract_strided_slice %9 {offsets = [0, 64], sizes = [8, 32], strides = [1, 1]} : vector<8x96xf32> to vector<8x32xf32>
    %22 = vector.extract_strided_slice %10 {offsets = [0, 64], sizes = [8, 32], strides = [1, 1]} : vector<8x96xf32> to vector<8x32xf32>
    %23 = arith.mulf %19, %22 : vector<8x32xf32>
    %24 = arith.addf %21, %23 : vector<8x32xf32>
    %25 = math.tanh %24 : vector<8x32xf32>
    %26 = arith.subf %0, %25 : vector<8x32xf32>
    %27 = arith.mulf %20, %26 : vector<8x32xf32>
    %28 = arith.addf %25, %27 : vector<8x32xf32>
    %c0_10 = arith.constant 0 : index
    %c0_11 = arith.constant 0 : index
    %29 = vector.load %arg5[%c0_10, %c0_11] : memref<8x32xf32, #tpu.memory_space<vmem>>, vector<8x32xf32>
    tpu.vector_store %arg5[%c0_10, %c0_11], %28 {strides = array<i32>} : memref<8x32xf32, #tpu.memory_space<vmem>>, vector<8x32xf32>,
    return
  }
}

</mosaic_0001>

<llo_original>
// kernel: tpu_custom_call.1
$region0: #{tpu_custom_call.1}
  #allocation0 [shape = 'u32[]', space=smem, size = 0x4, offset = 0x4, fixed_abs, tag = 'smem constant byte address 0x4 - core index']
  #allocation1 [shape = 'u32[144,128]{1,0:T(1,128)}', space=vmem, size = 0x12000, scoped, tag = 'internal scratch']
  %s0 = inlined_call_operand.hbm [shape: f32[8,16], index: 0, kind: input, shape index: {}]
  %s1 = inlined_call_operand.hbm [shape: f32[8,16], index: 1, kind: input, shape index: {}]
  %s2 = inlined_call_operand.hbm [shape: f32[8,32], index: 2, kind: input, shape index: {}]
  %s3 = inlined_call_operand.hbm [shape: f32[64,192], index: 3, kind: input, shape index: {}]
  %s4 = inlined_call_operand.vmem [shape: f32[1,192], index: 4, kind: input, shape index: {}]
  %s5 = inlined_call_operand.hbm [shape: f32[8,32], index: 5, kind: output, shape index: {}]
  %s6 = sld [smem:[#allocation0]]
  $region46: #{tpu_custom_call.1} parent=0
    _
  %s8 = ssub.s32 1, %s6
  %s9 = scalar_select 0, %s8, %s6
  $region1: #{tpu_custom_call.1} parent=0
    #allocation2 [shape = 'u8[4096]{0}', space=vmem, size = 0x1000, scoped, tag = 'input window, operand 0, single buffered']
    #allocation3 [shape = 's32[1]{0}', space=sflag, size = 0x4, scoped, tag = 'scoped memory for tpu_custom_call.1']
    #allocation4 [shape = 's32[1]{0}', space=sflag, size = 0x4, scoped, tag = 'scoped memory for tpu_custom_call.1']
    #allocation5 [shape = 'u8[4096]{0}', space=vmem, size = 0x1000, scoped, tag = 'input window, operand 1, single buffered']
    #allocation6 [shape = 's32[1]{0}', space=sflag, size = 0x4, scoped, tag = 'scoped memory for tpu_custom_call.1']
    #allocation7 [shape = 'u8[4096]{0}', space=vmem, size = 0x1000, scoped, tag = 'input window, operand 2, single buffered']
    #allocation8 [shape = 'u8[65536]{0}', space=vmem, size = 0x10000, scoped, tag = 'input window, operand 3, single buffered']
    #allocation9 [shape = 's32[1]{0}', space=sflag, size = 0x4, scoped, tag = 'scoped memory for tpu_custom_call.1']
    #allocation10 [shape = 'u8[4096]{0}', space=vmem, size = 0x1000, scoped, tag = 'output window, operand 0, single buffered']
    %10 = vsyncpa [#allocation3], 0
    %11 = vsyncpa [#allocation6], 0
    %12 = vsyncpa [#allocation9], 0
    %13 = vsyncpa [#allocation4], 0
    // Predicated region
    $region2: #{tpu_custom_call.1} parent=1 // pred_check
      _
    $region3: #{tpu_custom_call.1} parent=1 // pred_check_branch
      %15 = sbr.rel (0) target = $region5
    $region4: #{tpu_custom_call.1} parent=1 // pred_region
      %s17 = ssub.s32 128, 128
      %18 = vsyncadd [#allocation3], %s17
      %s20 = sshll.u32 [#allocation2], 4
      %s21 = int_to_ptr.vmem [resolvable:$true] %s20
      %23 = dma.hbm_to_vmem [thread:$0]  %s0, 128, %s21, [#allocation3]
    $region5: #{tpu_custom_call.1} parent=1 // pred_fallthru
      _
    // Predicated region
    $region6: #{tpu_custom_call.1} parent=1 // pred_check
      _
    $region7: #{tpu_custom_call.1} parent=1 // pred_check_branch
      %25 = sbr.rel (0) target = $region9
    $region8: #{tpu_custom_call.1} parent=1 // pred_region
      %s27 = ssub.s32 128, 128
      %28 = vsyncadd [#allocation6], %s27
      %s30 = sshll.u32 [#allocation5], 4
      %s31 = int_to_ptr.vmem [resolvable:$true] %s30
      %33 = dma.hbm_to_vmem [thread:$0]  %s1, 128, %s31, [#allocation6]
    $region9: #{tpu_custom_call.1} parent=1 // pred_fallthru
      _
    // Predicated region
    $region10: #{tpu_custom_call.1} parent=1 // pred_check
      _
    $region11: #{tpu_custom_call.1} parent=1 // pred_check_branch
      %35 = sbr.rel (0) target = $region13
    $region12: #{tpu_custom_call.1} parent=1 // pred_region
      %s37 = ssub.s32 128, 128
      %38 = vsyncadd [#allocation6], %s37
      %s40 = sshll.u32 [#allocation7], 4
      %s41 = int_to_ptr.vmem [resolvable:$true] %s40
      %43 = dma.hbm_to_vmem [thread:$0]  %s2, 128, %s41, [#allocation6]
    $region13: #{tpu_custom_call.1} parent=1 // pred_fallthru
      _
    // Predicated region
    $region14: #{tpu_custom_call.1} parent=1 // pred_check
      _
    $region15: #{tpu_custom_call.1} parent=1 // pred_check_branch
      %45 = sbr.rel (0) target = $region17
    $region16: #{tpu_custom_call.1} parent=1 // pred_region
      %s47 = ssub.s32 2048, 2048
      %48 = vsyncadd [#allocation9], %s47
      %s49 = sshll.u32 [#allocation8], 4
      %s50 = int_to_ptr.vmem [resolvable:$true] %s49
      %55 = dma.hbm_to_vmem [thread:$0]  %s3, 2048, %s50, [#allocation9], 256, 256, 16
    $region17: #{tpu_custom_call.1} parent=1 // pred_fallthru
      _
    // Predicated region
    $region18: #{tpu_custom_call.1} parent=1 // pred_check
      _
    $region19: #{tpu_custom_call.1} parent=1 // pred_check_branch
      %57 = sbr.rel (0) target = $region21
    $region20: #{tpu_custom_call.1} parent=1 // pred_region
      _
    $region21: #{tpu_custom_call.1} parent=1 // pred_fallthru
      _
    // Predicated region
    $region22: #{tpu_custom_call.1} parent=1 // pred_check
      _
    $region23: #{tpu_custom_call.1} parent=1 // pred_check_branch
      %59 = sbr.rel (0) target = $region25
    $region24: #{tpu_custom_call.1} parent=1 // pred_region
      %60 = dma.done [#allocation3], 128
    $region25: #{tpu_custom_call.1} parent=1 // pred_fallthru
      _
    // Predicated region
    $region26: #{tpu_custom_call.1} parent=1 // pred_check
      _
    $region27: #{tpu_custom_call.1} parent=1 // pred_check_branch
      %62 = sbr.rel (0) target = $region29
    $region28: #{tpu_custom_call.1} parent=1 // pred_region
      %63 = dma.done [#allocation6], 128
    $region29: #{tpu_custom_call.1} parent=1 // pred_fallthru
      _
    // Predicated region
    $region30: #{tpu_custom_call.1} parent=1 // pred_check
      _
    $region31: #{tpu_custom_call.1} parent=1 // pred_check_branch
      %65 = sbr.rel (0) target = $region33
    $region32: #{tpu_custom_call.1} parent=1 // pred_region
      %66 = dma.done [#allocation6], 128
    $region33: #{tpu_custom_call.1} parent=1 // pred_fallthru
      _
    // Predicated region
    $region34: #{tpu_custom_call.1} parent=1 // pred_check
      _
    $region35: #{tpu_custom_call.1} parent=1 // pred_check_branch
      %68 = sbr.rel (0) target = $region37
    $region36: #{tpu_custom_call.1} parent=1 // pred_region
      %69 = dma.done [#allocation9], 2048
    $region37: #{tpu_custom_call.1} parent=1 // pred_fallthru
      _
    %v70 = vld [vmem:[#allocation7] sm:$0xff]
    %v71 = vld [vmem:[#allocation2] sm:$0xff]
    %v72 = vld [vmem:[#allocation5] sm:$0xff]
    %74 = vrot.lane.b32.xlu0 %v72, 16
    %v75 = vpop.permute.xlu0 %74
    %78 = vrot.lane.b32.xlu0 %v70, 32
    %v79 = vpop.permute.xlu0 %78
    %vm81 = vcmask 130048
    %v82 = vsel %vm81, %v71, %v75
    %vm83 = vcmask 261120
    %v84 = vsel %vm83, %v82, %v79
    %v85 = vld [vmem:[#allocation8] sm:$0xff]
    %v86 = vld [vmem:[#allocation8 + $0x8] sm:$0xff]
    %v87 = vld [vmem:[#allocation8 + $0x10] sm:$0xff]
    %v88 = vld [vmem:[#allocation8 + $0x18] sm:$0xff]
    %v89 = vld [vmem:[#allocation8 + $0x20] sm:$0xff]
    %v90 = vld [vmem:[#allocation8 + $0x28] sm:$0xff]
    %v91 = vld [vmem:[#allocation8 + $0x30] sm:$0xff]
    %v92 = vld [vmem:[#allocation8 + $0x38] sm:$0xff]
    %v93 = vld [vmem:[#allocation8 + $0x40] sm:$0xff]
    %v94 = vld [vmem:[#allocation8 + $0x48] sm:$0xff]
    %v95 = vld [vmem:[#allocation8 + $0x50] sm:$0xff]
    %v96 = vld [vmem:[#allocation8 + $0x58] sm:$0xff]
    %v97 = vld [vmem:[#allocation8 + $0x60] sm:$0xff]
    %v98 = vld [vmem:[#allocation8 + $0x68] sm:$0xff]
    %v99 = vld [vmem:[#allocation8 + $0x70] sm:$0xff]
    %v100 = vld [vmem:[#allocation8 + $0x78] sm:$0xff]
    %v101 = vld [vmem:[%s4] sm:$0x3]
    %v103 = vlaneseq
    %v104 = vshrl.u32 %v103, 7
    %v105 = vsub.s32 0, %v104
    %v106 = vrot.slane %v101, %v105
    %v107 = vlaneseq
    %v108 = vshrl.u32 %v107, 7
    %v109 = vsub.s32 1, %v108
    %v110 = vrot.slane %v101, %v109
    %vm113 = vcmask 523264
    %v115 = vsel %vm113, %v84, 0
    %117 = vmatprep.subr.mxu0 %v86
    %118 = vmatpush1.msra.mxu0 %v85
    %119 = vmatprep.subr.mxu0 %v88
    %120 = vmatpush1.msra.mxu0 %v87
    %121 = vmatprep.subr.mxu0 %v90
    %122 = vmatpush1.msra.mxu0 %v89
    %123 = vmatprep.subr.mxu0 %v92
    %124 = vmatpush1.msra.mxu0 %v91
    %125 = vmatprep.subr.mxu0 %v94
    %126 = vmatpush1.msra.mxu0 %v93
    %127 = vmatprep.subr.mxu0 %v96
    %128 = vmatpush1.msra.mxu0 %v95
    %129 = vmatprep.subr.mxu0 %v98
    %130 = vmatpush1.msra.mxu0 %v97
    %131 = vmatprep.subr.mxu0 %v100
    %132 = vmatpush1.msra.mxu0 %v99
    %133 = vmatprep.subr.mxu0 0.0
    %134 = vmatpush1.msra.mxu0 0.0
    %135 = vmatprep.subr.mxu0 0.0
    %136 = vmatpush1.msra.mxu0 0.0
    %137 = vmatprep.subr.mxu0 0.0
    %138 = vmatpush1.msra.mxu0 0.0
    %139 = vmatprep.subr.mxu0 0.0
    %140 = vmatpush1.msra.mxu0 0.0
    %141 = vmatprep.subr.mxu0 0.0
    %142 = vmatpush1.msra.mxu0 0.0
    %143 = vmatprep.subr.mxu0 0.0
    %144 = vmatpush1.msra.mxu0 0.0
    %145 = vmatprep.subr.mxu0 0.0
    %146 = vmatpush1.msra.mxu0 0.0
    %147 = vmatprep.subr.mxu0 0.0
    %148 = vmatpush1.msra.mxu0 0.0
    %149 = vmatprep.subr.mxu0 0.0
    %150 = vmatpush1.msra.mxu0 0.0
    %151 = vmatprep.subr.mxu0 0.0
    %152 = vmatpush1.msra.mxu0 0.0
    %153 = vmatprep.subr.mxu0 0.0
    %154 = vmatpush1.msra.mxu0 0.0
    %155 = vmatprep.subr.mxu0 0.0
    %156 = vmatpush1.msra.mxu0 0.0
    %157 = vmatprep.subr.mxu0 0.0
    %158 = vmatpush1.msra.mxu0 0.0
    %159 = vmatprep.subr.mxu0 0.0
    %160 = vmatpush1.msra.mxu0 0.0
    %161 = vmatprep.subr.mxu0 0.0
    %162 = vmatpush1.msra.mxu0 0.0
    %163 = vmatprep.subr.mxu0 0.0
    %164 = vmatpush1.msra.mxu0 0.0
    %165 = vmatprep.subr.mxu0 0.0
    %166 = vmatpush1.msra.mxu0 0.0
    %167 = vmatprep.subr.mxu0 0.0
    %168 = vmatpush1.msra.mxu0 0.0
    %169 = vmatprep.subr.mxu0 0.0
    %170 = vmatpush1.msra.mxu0 0.0
    %171 = vmatprep.subr.mxu0 0.0
    %172 = vmatpush1.msra.mxu0 0.0
    %173 = vmatprep.subr.mxu0 0.0
    %174 = vmatpush1.msra.mxu0 0.0
    %175 = vmatprep.subr.mxu0 0.0
    %176 = vmatpush1.msra.mxu0 0.0
    %177 = vmatprep.subr.mxu0 0.0
    %178 = vmatpush1.msra.mxu0 0.0
    %179 = vmatprep.subr.mxu0 0.0
    %180 = vmatpush1.msra.mxu0 0.0
    %181 = vmatprep.mubr.f32.mxu0 0.0
    %182 = vmatmul.mubr.f32.gmra.mrb[0].mxu0 %v115
    %v183 = vpop.f32.mrb[0].mxu0
    %v184 = vadd.f32 %v106, %v183
    %v185 = vpop.f32.mrb[0].mxu0
    %v186 = vadd.f32 %v110, %v185
    %187 = vdwg.mxu0
    %190 = vrot.lane.b32.xlu0 %v184, 32
    %v191 = vpop.permute.xlu0 %190
    %192 = vrot.lane.b32.xlu0 %v186, 32
    %v193 = vpop.permute.xlu0 %192
    %v194 = vsel %vm83, %v191, %v193
    %v196 = vadd.f32 %v184, %v194
    %v197 = vxor.u32 %v196, 2147483648
    %v198 = vmul.f32 %v197, 1.442695
    %v199 = vpow.pop %v198
    %v200 = vadd.f32 %v199, 1.0
    %v201 = vrcp.pop %v200
    %v202 = vmul.f32 1.0, %v201
    %203 = vrot.lane.b32.xlu0 %v186, 96
    %v204 = vpop.permute.xlu0 %203
    %v206 = vmul.f32 %v202, %v204
    %208 = vrot.lane.b32.xlu0 %v206, 64
    %v209 = vpop.permute.xlu0 %208
    %v211 = vadd.f32 %v184, %v209
    %v212 = vtanh.pop %v211
    %214 = vrot.lane.b32.xlu0 %v212, 64
    %v215 = vpop.permute.xlu0 %214
    %v217 = vsub.f32 %v70, %v215
    %219 = vrot.lane.b32.xlu0 %v217, 32
    %v220 = vpop.permute.xlu0 %219
    %v222 = vmul.f32 %v202, %v220
    %224 = vrot.lane.b32.xlu0 %v222, 32
    %v225 = vpop.permute.xlu0 %224
    %v227 = vadd.f32 %v212, %v225
    %229 = vrot.lane.b32.xlu0 %v227, 64
    %v230 = vpop.permute.xlu0 %229
    %232 = vst.msk [vmem:[#allocation10] sm:$0xff] %vm83, %v230
    // Predicated region
    $region38: #{tpu_custom_call.1} parent=1 // pred_check
      _
    $region39: #{tpu_custom_call.1} parent=1 // pred_check_branch
      %234 = sbr.rel (0) target = $region41
    $region40: #{tpu_custom_call.1} parent=1 // pred_region
      %s236 = ssub.s32 128, 128
      %237 = vsyncadd [#allocation4], %s236
      %s239 = sshll.u32 [#allocation10], 4
      %s240 = int_to_ptr.vmem [resolvable:$true] %s239
      %242 = dma.vmem_to_hbm [thread:$0]  %s240, 128, %s5, [#allocation4]
    $region41: #{tpu_custom_call.1} parent=1 // pred_fallthru
      _
    // Predicated region
    $region42: #{tpu_custom_call.1} parent=1 // pred_check
      _
    $region43: #{tpu_custom_call.1} parent=1 // pred_check_branch
      %244 = sbr.rel (0) target = $region45
    $region44: #{tpu_custom_call.1} parent=1 // pred_region
      %245 = dma.done [#allocation4], 128
    $region45: #{tpu_custom_call.1} parent=1 // pred_fallthru
      _
    %246 = vsyncpa [#allocation3], 1
    %247 = vsyncpa [#allocation6], 1
    %248 = vsyncpa [#allocation9], 1
    %249 = vsyncpa [#allocation4], 1

</llo_original>
